<compile_context>
chip_gen: v7x
topology: tpu7x:2x2x1
jax: 0.10.0
libtpu: 0.0.40
codegen_flags: <defaults>
</compile_context>

<pallas_src>
import functools

import jax
import jax.numpy as jnp
from jax.experimental import pallas as pl
from jax.experimental.pallas import tpu as pltpu

LANE = 128
SUBLANE = 8


def _num_tensorcores() -> int:
    """Trace-time choice of the megacore split: 1 on v5e/v6e, 2 on v7x."""
    try:
        info = pltpu.get_tpu_info()
        for attr in ("num_cores", "core_count", "num_tensorcores",
                     "tensorcore_count", "num_tensor_cores"):
            v = getattr(info, attr, None)
            if v:
                return max(1, min(2, int(v)))
    except Exception:
        pass
    try:
        kind = jax.devices()[0].device_kind.lower()
        if "v7" in kind:
            return 2
    except Exception:
        pass
    return 1


def _dice_kernel(x_ref, y_ref, oi_ref, ou_ref, *, tm, steps, nblocks, m):
    p = pl.program_id(0)   # partition / core axis
    s = pl.program_id(1)   # streaming reduction axis ("arbitrary")

    # Output blocks double as per-partition accumulators (same block for all s).
    @pl.when(s == 0)
    def _():
        oi_ref[...] = jnp.zeros_like(oi_ref)
        ou_ref[...] = jnp.zeros_like(ou_ref)

    b = p * steps + s   # unclamped logical block index

    def accumulate(xv, yv):
        # Sub-tile (vreg-aligned) partial sums: pure VPU adds, no per-step
        # cross-lane XLU reduction.  sum(x)+sum(y) fused as one reduction.
        prod = (xv * yv).reshape(1, tm // SUBLANE, SUBLANE, LANE)
        both = (xv + yv).reshape(1, tm // SUBLANE, SUBLANE, LANE)
        oi_ref[...] += jnp.sum(prod, axis=1)
        ou_ref[...] += jnp.sum(both, axis=1)

    # Fast path: every block except the last real one (and any clamped
    # duplicate blocks with b >= nblocks) is guaranteed fully valid.
    @pl.when(b < nblocks - 1)
    def _():
        accumulate(x_ref[...].astype(jnp.float32),
                   y_ref[...].astype(jnp.float32))

    # Tail path: mask rows >= m (ragged tail rows are stale VMEM from the
    # clipped DMA; duplicate blocks with b >= nblocks must contribute zero).
    @pl.when(b >= nblocks - 1)
    def _():
        rows = b * tm + jax.lax.broadcasted_iota(jnp.int32, (tm, LANE), 0)
        valid = rows < m
        accumulate(jnp.where(valid, x_ref[...].astype(jnp.float32), 0.0),
                   jnp.where(valid, y_ref[...].astype(jnp.float32), 0.0))


def dice_loss(logits, targets, *, target_block_bytes=2 << 20):
    """Pallas implementation of DiceLoss.forward(logits, targets) -> scalar."""
    assert logits.shape == targets.shape
    x = logits.reshape(-1)          # native dtype; cast happens in-kernel
    y = targets.reshape(-1)
    n = x.shape[0]

    # Lane alignment.  Common case (n % 128 == 0): the reshape is free.
    # Rare misaligned case: pad < 128 zero elements (zeros contribute nothing).
    lane_pad = (-n) % LANE
    if lane_pad:
        x = jnp.pad(x, (0, lane_pad))
        y = jnp.pad(y, (0, lane_pad))
    m = (n + lane_pad) // LANE
    x2 = x.reshape(m, LANE)
    y2 = y.reshape(m, LANE)

    # Dtype-aware row-tile: ~target_block_bytes per input block, multiple of 8
    # sublanes, no larger than the (sublane-rounded) array.
    itemsize = jnp.dtype(x2.dtype).itemsize
    tm = max(SUBLANE, target_block_bytes // (LANE * itemsize))
    tm = (tm // SUBLANE) * SUBLANE
    m_rounded = ((m + SUBLANE - 1) // SUBLANE) * SUBLANE
    tm = max(SUBLANE, min(tm, m_rounded))

    nblocks = pl.cdiv(m, tm)
    num_parts = max(1, min(_num_tensorcores(), nblocks))
    steps = pl.cdiv(nblocks, num_parts)

    def in_map(p, s):
        # Clamp so out-of-range (duplicate) blocks never DMA out of bounds;
        # the in-kernel tail mask zeroes their contribution.
        return (jnp.minimum(p * steps + s, nblocks - 1), 0)

    kernel = functools.partial(
        _dice_kernel, tm=tm, steps=steps, nblocks=nblocks, m=m)

    def run(part_sem, n_buffers):
        if n_buffers == 2:
            in_spec = pl.BlockSpec((tm, LANE), in_map)
        else:
            in_spec = pl.BlockSpec((tm, LANE), in_map,
                                   pipeline_mode=pl.Buffered(n_buffers))
        return pl.pallas_call(
            kernel,
            out_shape=(
                jax.ShapeDtypeStruct((num_parts, SUBLANE, LANE), jnp.float32),
                jax.ShapeDtypeStruct((num_parts, SUBLANE, LANE), jnp.float32),
            ),
            grid_spec=pltpu.PrefetchScalarGridSpec(
                num_scalar_prefetch=0,
                grid=(num_parts, steps),
                in_specs=[in_spec, in_spec],
                out_specs=(
                    pl.BlockSpec((1, SUBLANE, LANE), lambda p, s: (p, 0, 0)),
                    pl.BlockSpec((1, SUBLANE, LANE), lambda p, s: (p, 0, 0)),
                ),
            ),
            compiler_params=pltpu.CompilerParams(
                dimension_semantics=(part_sem, pltpu.ARBITRARY)),
        )(x2, y2)

    if num_parts > 1:
        # v7x: real 2-TC split + triple-buffered inputs; fall back to the
        # portable configuration if this lowering is rejected.
        try:
            oi, ou = run(pltpu.CORE_PARALLEL, 3)
        except Exception:
            oi, ou = run("parallel", 2)
    else:
        oi, ou = run("arbitrary", 2)

    # Tiny final reduction + dice formula on (num_parts, 8, 128) partials.
    intsn = jnp.sum(oi)
    union = jnp.sum(ou)
    return 1.0 - (2.0 * intsn + 1.0) / (union + 1.0)


def dice_loss_ref(logits, targets):
    x = logits.astype(jnp.float32)
    y = targets.astype(jnp.float32)
    intsn = jnp.sum(x * y)
    union = jnp.sum(x) + jnp.sum(y)
    return 1.0 - (2.0 * intsn + 1.0) / (union + 1.0)


if __name__ == "__main__":
    key = jax.random.PRNGKey(0)
    k1, k2 = jax.random.split(key)

    # Small NCHW-shaped inputs, consistent with a segmentation use-case.
    shape = (2, 4, 16, 16)
    logits = jax.nn.sigmoid(jax.random.normal(k1, shape, dtype=jnp.float32))
    targets = (jax.random.uniform(k2, shape) > 0.5).astype(jnp.float32)

    loss = jax.block_until_ready(dice_loss(logits, targets))
    ref = jax.block_until_ready(dice_loss_ref(logits, targets))
    assert jnp.allclose(loss, ref, rtol=1e-5, atol=1e-5), (loss, ref)

    print("KERNEL_OK")
</pallas_src>

<mosaic_0001>
module attributes {stable_mosaic.version = 11 : i64} {
  func.func @_dice_kernel(%arg0: i32, %arg1: i32, %arg2: memref<16x128xf32, #tpu.memory_space<vmem>>, %arg3: memref<16x128xf32, #tpu.memory_space<vmem>>, %arg4: memref<1x8x128xf32, #tpu.memory_space<vmem>>, %arg5: memref<1x8x128xf32, #tpu.memory_space<vmem>>) attributes {dimension_semantics = [#tpu.dimension_semantics<arbitrary>, #tpu.dimension_semantics<arbitrary>], iteration_bounds = array<i64: 1, 1>, scalar_prefetch = 0 : i64, scratch_operands = 0 : i64, tpu.core_type = #tpu.core_type<tc>, window_params = [{transform_indices = @transform_0, window_bounds = array<i64: 16, 128>}, {transform_indices = @transform_1, window_bounds = array<i64: 16, 128>}, {transform_indices = @transform_2, window_bounds = array<i64: 1, 8, 128>}, {transform_indices = @transform_3, window_bounds = array<i64: 1, 8, 128>}]} {
    %c0_i32 = arith.constant 0 : i32
    %0 = arith.cmpi eq, %arg1, %c0_i32 : i32
    %1 = arith.extui %0 : i1 to i32
    %c0_i32_0 = arith.constant 0 : i32
    %2 = arith.cmpi ne, %1, %c0_i32_0 : i32
    scf.if %2 {
      %cst = arith.constant 0.000000e+00 : f32
      %11 = vector.broadcast %cst : f32 to vector<1x8x128xf32>
      %c0 = arith.constant 0 : index
      %c0_5 = arith.constant 0 : index
      %c0_6 = arith.constant 0 : index
      %12 = vector.load %arg4[%c0, %c0_5, %c0_6] : memref<1x8x128xf32, #tpu.memory_space<vmem>>, vector<1x8x128xf32>
      tpu.vector_store %arg4[%c0, %c0_5, %c0_6], %11 {strides = array<i32>} : memref<1x8x128xf32, #tpu.memory_space<vmem>>, vector<1x8x128xf32>,
      %cst_7 = arith.constant 0.000000e+00 : f32
      %13 = vector.broadcast %cst_7 : f32 to vector<1x8x128xf32>
      %c0_8 = arith.constant 0 : index
      %c0_9 = arith.constant 0 : index
      %c0_10 = arith.constant 0 : index
      %14 = vector.load %arg5[%c0_8, %c0_9, %c0_10] : memref<1x8x128xf32, #tpu.memory_space<vmem>>, vector<1x8x128xf32>
      tpu.vector_store %arg5[%c0_8, %c0_9, %c0_10], %13 {strides = array<i32>} : memref<1x8x128xf32, #tpu.memory_space<vmem>>, vector<1x8x128xf32>,
    } else {
    }
    %c1_i32 = arith.constant 1 : i32
    %3 = arith.muli %arg0, %c1_i32 : i32
    %4 = arith.addi %3, %arg1 : i32
    %c0_i32_1 = arith.constant 0 : i32
    %5 = arith.cmpi slt, %4, %c0_i32_1 : i32
    %6 = arith.extui %5 : i1 to i32
    %c0_i32_2 = arith.constant 0 : i32
    %7 = arith.cmpi ne, %6, %c0_i32_2 : i32
    scf.if %7 {
      %c0 = arith.constant 0 : index
      %c0_5 = arith.constant 0 : index
      %11 = vector.load %arg2[%c0, %c0_5] : memref<16x128xf32, #tpu.memory_space<vmem>>, vector<16x128xf32>
      %c0_6 = arith.constant 0 : index
      %c0_7 = arith.constant 0 : index
      %12 = vector.load %arg3[%c0_6, %c0_7] : memref<16x128xf32, #tpu.memory_space<vmem>>, vector<16x128xf32>
      %13 = arith.mulf %11, %12 : vector<16x128xf32>
      %14 = vector.shape_cast %13 : vector<16x128xf32> to vector<1x2x8x128xf32>
      %15 = arith.addf %11, %12 : vector<16x128xf32>
      %16 = vector.shape_cast %15 : vector<16x128xf32> to vector<1x2x8x128xf32>
      %c0_8 = arith.constant 0 : index
      %c0_9 = arith.constant 0 : index
      %c0_10 = arith.constant 0 : index
      %17 = vector.load %arg4[%c0_8, %c0_9, %c0_10] : memref<1x8x128xf32, #tpu.memory_space<vmem>>, vector<1x8x128xf32>
      %cst = arith.constant dense<0.000000e+00> : vector<1x8x128xf32>
      %18 = vector.multi_reduction <add>, %14, %cst [1] : vector<1x2x8x128xf32> to vector<1x8x128xf32>
      %19 = arith.addf %17, %18 : vector<1x8x128xf32>
      %c0_11 = arith.constant 0 : index
      %c0_12 = arith.constant 0 : index
      %c0_13 = arith.constant 0 : index
      %20 = vector.load %arg4[%c0_11, %c0_12, %c0_13] : memref<1x8x128xf32, #tpu.memory_space<vmem>>, vector<1x8x128xf32>
      tpu.vector_store %arg4[%c0_11, %c0_12, %c0_13], %19 {strides = array<i32>} : memref<1x8x128xf32, #tpu.memory_space<vmem>>, vector<1x8x128xf32>,
      %c0_14 = arith.constant 0 : index
      %c0_15 = arith.constant 0 : index
      %c0_16 = arith.constant 0 : index
      %21 = vector.load %arg5[%c0_14, %c0_15, %c0_16] : memref<1x8x128xf32, #tpu.memory_space<vmem>>, vector<1x8x128xf32>
      %cst_17 = arith.constant dense<0.000000e+00> : vector<1x8x128xf32>
      %22 = vector.multi_reduction <add>, %16, %cst_17 [1] : vector<1x2x8x128xf32> to vector<1x8x128xf32>
      %23 = arith.addf %21, %22 : vector<1x8x128xf32>
      %c0_18 = arith.constant 0 : index
      %c0_19 = arith.constant 0 : index
      %c0_20 = arith.constant 0 : index
      %24 = vector.load %arg5[%c0_18, %c0_19, %c0_20] : memref<1x8x128xf32, #tpu.memory_space<vmem>>, vector<1x8x128xf32>
      tpu.vector_store %arg5[%c0_18, %c0_19, %c0_20], %23 {strides = array<i32>} : memref<1x8x128xf32, #tpu.memory_space<vmem>>, vector<1x8x128xf32>,
    } else {
    }
    %c0_i32_3 = arith.constant 0 : i32
    %8 = arith.cmpi sge, %4, %c0_i32_3 : i32
    %9 = arith.extui %8 : i1 to i32
    %c0_i32_4 = arith.constant 0 : i32
    %10 = arith.cmpi ne, %9, %c0_i32_4 : i32
    scf.if %10 {
      %c16_i32 = arith.constant 16 : i32
      %11 = arith.muli %4, %c16_i32 : i32
      %12 = tpu.iota {dimensions = array<i32: 0>} : vector<16x128xi32>
      %13 = vector.broadcast %11 : i32 to vector<16x128xi32>
      %14 = arith.addi %13, %12 : vector<16x128xi32>
      %c16_i32_5 = arith.constant 16 : i32
      %15 = vector.broadcast %c16_i32_5 : i32 to vector<16x128xi32>
      %16 = arith.cmpi slt, %14, %15 : vector<16x128xi32>
      %c0 = arith.constant 0 : index
      %c0_6 = arith.constant 0 : index
      %17 = vector.load %arg2[%c0, %c0_6] : memref<16x128xf32, #tpu.memory_space<vmem>>, vector<16x128xf32>
      %cst = arith.constant 0.000000e+00 : f32
      %18 = vector.broadcast %cst : f32 to vector<16x128xf32>
      %19 = arith.select %16, %17, %18 : vector<16x128xi1>, vector<16x128xf32>
      %c0_7 = arith.constant 0 : index
      %c0_8 = arith.constant 0 : index
      %20 = vector.load %arg3[%c0_7, %c0_8] : memref<16x128xf32, #tpu.memory_space<vmem>>, vector<16x128xf32>
      %cst_9 = arith.constant 0.000000e+00 : f32
      %21 = vector.broadcast %cst_9 : f32 to vector<16x128xf32>
      %22 = arith.select %16, %20, %21 : vector<16x128xi1>, vector<16x128xf32>
      %23 = arith.mulf %19, %22 : vector<16x128xf32>
      %24 = vector.shape_cast %23 : vector<16x128xf32> to vector<1x2x8x128xf32>
      %25 = arith.addf %19, %22 : vector<16x128xf32>
      %26 = vector.shape_cast %25 : vector<16x128xf32> to vector<1x2x8x128xf32>
      %c0_10 = arith.constant 0 : index
      %c0_11 = arith.constant 0 : index
      %c0_12 = arith.constant 0 : index
      %27 = vector.load %arg4[%c0_10, %c0_11, %c0_12] : memref<1x8x128xf32, #tpu.memory_space<vmem>>, vector<1x8x128xf32>
      %cst_13 = arith.constant dense<0.000000e+00> : vector<1x8x128xf32>
      %28 = vector.multi_reduction <add>, %24, %cst_13 [1] : vector<1x2x8x128xf32> to vector<1x8x128xf32>
      %29 = arith.addf %27, %28 : vector<1x8x128xf32>
      %c0_14 = arith.constant 0 : index
      %c0_15 = arith.constant 0 : index
      %c0_16 = arith.constant 0 : index
      %30 = vector.load %arg4[%c0_14, %c0_15, %c0_16] : memref<1x8x128xf32, #tpu.memory_space<vmem>>, vector<1x8x128xf32>
      tpu.vector_store %arg4[%c0_14, %c0_15, %c0_16], %29 {strides = array<i32>} : memref<1x8x128xf32, #tpu.memory_space<vmem>>, vector<1x8x128xf32>,
      %c0_17 = arith.constant 0 : index
      %c0_18 = arith.constant 0 : index
      %c0_19 = arith.constant 0 : index
      %31 = vector.load %arg5[%c0_17, %c0_18, %c0_19] : memref<1x8x128xf32, #tpu.memory_space<vmem>>, vector<1x8x128xf32>
      %cst_20 = arith.constant dense<0.000000e+00> : vector<1x8x128xf32>
      %32 = vector.multi_reduction <add>, %26, %cst_20 [1] : vector<1x2x8x128xf32> to vector<1x8x128xf32>
      %33 = arith.addf %31, %32 : vector<1x8x128xf32>
      %c0_21 = arith.constant 0 : index
      %c0_22 = arith.constant 0 : index
      %c0_23 = arith.constant 0 : index
      %34 = vector.load %arg5[%c0_21, %c0_22, %c0_23] : memref<1x8x128xf32, #tpu.memory_space<vmem>>, vector<1x8x128xf32>
      tpu.vector_store %arg5[%c0_21, %c0_22, %c0_23], %33 {strides = array<i32>} : memref<1x8x128xf32, #tpu.memory_space<vmem>>, vector<1x8x128xf32>,
    } else {
    }
    return
  }
  func.func @transform_0(%arg0: i32, %arg1: i32) -> (i32, i32) {
    %c1_i32 = arith.constant 1 : i32
    %0 = arith.muli %arg0, %c1_i32 : i32
    %1 = arith.addi %0, %arg1 : i32
    %c0_i32 = arith.constant 0 : i32
    %2 = arith.minsi %1, %c0_i32 : i32
    %c0_i32_0 = arith.constant 0 : i32
    %c0_i32_1 = arith.constant 0 : i32
    return %2, %c0_i32_0 : i32, i32
  }
  func.func @transform_1(%arg0: i32, %arg1: i32) -> (i32, i32) {
    %c1_i32 = arith.constant 1 : i32
    %0 = arith.muli %arg0, %c1_i32 : i32
    %1 = arith.addi %0, %arg1 : i32
    %c0_i32 = arith.constant 0 : i32
    %2 = arith.minsi %1, %c0_i32 : i32
    %c0_i32_0 = arith.constant 0 : i32
    %c0_i32_1 = arith.constant 0 : i32
    return %2, %c0_i32_0 : i32, i32
  }
  func.func @transform_2(%arg0: i32, %arg1: i32) -> (i32, i32, i32) {
    %c0_i32 = arith.constant 0 : i32
    %c0_i32_0 = arith.constant 0 : i32
    %c0_i32_1 = arith.constant 0 : i32
    return %arg0, %c0_i32, %c0_i32_0 : i32, i32, i32
  }
  func.func @transform_3(%arg0: i32, %arg1: i32) -> (i32, i32, i32) {
    %c0_i32 = arith.constant 0 : i32
    %c0_i32_0 = arith.constant 0 : i32
    %c0_i32_1 = arith.constant 0 : i32
    return %arg0, %c0_i32, %c0_i32_0 : i32, i32, i32
  }
}

</mosaic_0001>

<llo_original>
// kernel: tpu_custom_call.1
$region0: #{tpu_custom_call.1}
  #allocation0 [shape = 'u32[]', space=smem, size = 0x4, offset = 0x4, fixed_abs, tag = 'smem constant byte address 0x4 - core index']
  #allocation1 [shape = 'u32[144,128]{1,0:T(1,128)}', space=vmem, size = 0x12000, scoped, tag = 'internal scratch']
  %s0 = inlined_call_operand.hbm [shape: f32[16,128], index: 0, kind: input, shape index: {}]
  %s1 = inlined_call_operand.hbm [shape: f32[16,128], index: 1, kind: input, shape index: {}]
  %s2 = inlined_call_operand.hbm [shape: f32[1,8,128], index: 2, kind: output, shape index: {0}]
  %s3 = inlined_call_operand.hbm [shape: f32[1,8,128], index: 3, kind: output, shape index: {1}]
  %4 = xla_tuple %s2, %s3
  %s5 = sld [smem:[#allocation0]]
  $region46: #{tpu_custom_call.1} parent=0
    _
  %s7 = ssub.s32 1, %s5
  %s8 = scalar_select 0, %s7, %s5
  $region1: #{tpu_custom_call.1} parent=0
    #allocation2 [shape = 'u8[8192]{0}', space=vmem, size = 0x2000, scoped, tag = 'input window, operand 0, single buffered']
    #allocation3 [shape = 's32[1]{0}', space=sflag, size = 0x4, scoped, tag = 'scoped memory for tpu_custom_call.1']
    #allocation4 [shape = 's32[1]{0}', space=sflag, size = 0x4, scoped, tag = 'scoped memory for tpu_custom_call.1']
    #allocation5 [shape = 'u8[8192]{0}', space=vmem, size = 0x2000, scoped, tag = 'input window, operand 1, single buffered']
    #allocation6 [shape = 's32[1]{0}', space=sflag, size = 0x4, scoped, tag = 'scoped memory for tpu_custom_call.1']
    #allocation7 [shape = 'u8[4096]{0}', space=vmem, size = 0x1000, scoped, tag = 'output window, operand 0, single buffered']
    #allocation8 [shape = 'u8[4096]{0}', space=vmem, size = 0x1000, scoped, tag = 'output window, operand 1, single buffered']
    #allocation9 [shape = 's32[1]{0}', space=sflag, size = 0x4, scoped, tag = 'scoped memory for tpu_custom_call.1']
    %9 = vsyncpa [#allocation3], 0
    %10 = vsyncpa [#allocation6], 0
    %11 = vsyncpa [#allocation4], 0
    %12 = vsyncpa [#allocation9], 0
    // Predicated region
    $region2: #{tpu_custom_call.1} parent=1 // pred_check
      _
    $region3: #{tpu_custom_call.1} parent=1 // pred_check_branch
      %14 = sbr.rel (0) target = $region5
    $region4: #{tpu_custom_call.1} parent=1 // pred_region
      %s15 = sadd.s32 0, 0
      %p16 = scmp.lt.s32.totalorder %s15, 0
      %s17 = scalar_select %p16, %s15, 0
      %s18 = smul.u32 2, %s17
      %s20 = ssub.s32 256, 256
      %21 = vsyncadd [#allocation3], %s20
      %s22 = smul.addr %s18, 128
      %s23 = scalar_lea.hbm %s0, %s22
      %s24 = sshll.u32 [#allocation2], 4
      %s25 = int_to_ptr.vmem [resolvable:$true] %s24
      %30 = dma.hbm_to_vmem [thread:$0]  %s23, 256, %s25, [#allocation3], 128, 128, 8
    $region5: #{tpu_custom_call.1} parent=1 // pred_fallthru
      _
    // Predicated region
    $region6: #{tpu_custom_call.1} parent=1 // pred_check
      _
    $region7: #{tpu_custom_call.1} parent=1 // pred_check_branch
      %32 = sbr.rel (0) target = $region9
    $region8: #{tpu_custom_call.1} parent=1 // pred_region
      %s33 = sadd.s32 0, 0
      %p34 = scmp.lt.s32.totalorder %s33, 0
      %s35 = scalar_select %p34, %s33, 0
      %s36 = smul.u32 2, %s35
      %s38 = ssub.s32 256, 256
      %39 = vsyncadd [#allocation6], %s38
      %s40 = smul.addr %s36, 128
      %s41 = scalar_lea.hbm %s1, %s40
      %s42 = sshll.u32 [#allocation5], 4
      %s43 = int_to_ptr.vmem [resolvable:$true] %s42
      %48 = dma.hbm_to_vmem [thread:$0]  %s41, 256, %s43, [#allocation6], 128, 128, 8
    $region9: #{tpu_custom_call.1} parent=1 // pred_fallthru
      _
    // Predicated region
    $region10: #{tpu_custom_call.1} parent=1 // pred_check
      _
    $region11: #{tpu_custom_call.1} parent=1 // pred_check_branch
      %50 = sbr.rel (0) target = $region13
    $region12: #{tpu_custom_call.1} parent=1 // pred_region
      %51 = dma.done [#allocation3], 256
    $region13: #{tpu_custom_call.1} parent=1 // pred_fallthru
      _
    // Predicated region
    $region14: #{tpu_custom_call.1} parent=1 // pred_check
      _
    $region15: #{tpu_custom_call.1} parent=1 // pred_check_branch
      %53 = sbr.rel (0) target = $region17
    $region16: #{tpu_custom_call.1} parent=1 // pred_region
      %54 = dma.done [#allocation6], 256
    $region17: #{tpu_custom_call.1} parent=1 // pred_fallthru
      _
    %s55 = sadd.s32 0, 0
    %p56 = scmp.lt.s32.totalorder %s55, 0
    %s57 = scalar_select %p56, %s55, 0
    %s58 = smul.u32 2, %s57
    %s59 = sadd.s32 0, 0
    %p60 = scmp.lt.s32.totalorder %s59, 0
    %s61 = scalar_select %p60, %s59, 0
    %s62 = smul.u32 2, %s61
    %p63 = scmp.eq.s32.totalorder 0, 0
    // Predicated region
    $region18: #{tpu_custom_call.1} parent=1 // pred_check
      %p64 = pneg %p63
    $region19: #{tpu_custom_call.1} parent=1 // pred_check_branch
      %66 = sbr.rel (%p64) target = $region21
    $region20: #{tpu_custom_call.1} parent=1 // pred_region
      %67 = vst [vmem:[#allocation7] sm:$0xff] 0.0
      %68 = vst [vmem:[#allocation8] sm:$0xff] 0.0
    $region21: #{tpu_custom_call.1} parent=1 // pred_fallthru
      _
    %s69 = sadd.s32 0, 0
    %p70 = scmp.lt.s32.totalorder %s69, 0
    // Predicated region
    $region22: #{tpu_custom_call.1} parent=1 // pred_check
      %p71 = pneg %p70
    $region23: #{tpu_custom_call.1} parent=1 // pred_check_branch
      %73 = sbr.rel (%p71) target = $region25
    $region24: #{tpu_custom_call.1} parent=1 // pred_region
      %v74 = vld [vmem:[#allocation2] sm:$0xff]
      %v75 = vld [vmem:[#allocation2 + $0x8] sm:$0xff]
      %v76 = vld [vmem:[#allocation5] sm:$0xff]
      %v77 = vld [vmem:[#allocation5 + $0x8] sm:$0xff]
      %v78 = vmul.f32 %v74, %v76
      %v79 = vmul.f32 %v75, %v77
      %v80 = vadd.f32 %v74, %v76
      %v81 = vadd.f32 %v75, %v77
      %v82 = vld [vmem:[#allocation7] sm:$0xff]
      %v83 = vadd.f32 %v78, %v79
      %v84 = vadd.f32 %v82, %v83
      %85 = vst [vmem:[#allocation7] sm:$0xff] %v84
      %v86 = vld [vmem:[#allocation8] sm:$0xff]
      %v87 = vadd.f32 %v80, %v81
      %v88 = vadd.f32 %v86, %v87
      %89 = vst [vmem:[#allocation8] sm:$0xff] %v88
    $region25: #{tpu_custom_call.1} parent=1 // pred_fallthru
      _
    %p90 = scmp.ge.s32.totalorder %s69, 0
    // Predicated region
    $region26: #{tpu_custom_call.1} parent=1 // pred_check
      %p91 = pneg %p90
    $region27: #{tpu_custom_call.1} parent=1 // pred_check_branch
      %93 = sbr.rel (%p91) target = $region29
    $region28: #{tpu_custom_call.1} parent=1 // pred_region
      %s94 = smul.u32 %s69, 16
      %v95 = vlaneseq
      %v96 = vshrl.u32 %v95, 7
      %v97 = vadd.s32 %v96, 8
      %v98 = vstv %s94
      %v99 = vadd.s32 %v98, %v96
      %v100 = vadd.s32 %v98, %v97
      %vm101 = vcmp.lt.s32.totalorder %v99, 16
      %vm102 = vcmp.lt.s32.totalorder %v100, 16
      %v103 = vld [vmem:[#allocation2] sm:$0xff]
      %v104 = vld [vmem:[#allocation2 + $0x8] sm:$0xff]
      %v105 = vsel %vm101, %v103, 0.0
      %v106 = vsel %vm102, %v104, 0.0
      %v107 = vld [vmem:[#allocation5] sm:$0xff]
      %v108 = vld [vmem:[#allocation5 + $0x8] sm:$0xff]
      %v109 = vsel %vm101, %v107, 0.0
      %v110 = vsel %vm102, %v108, 0.0
      %v111 = vmul.f32 %v105, %v109
      %v112 = vmul.f32 %v106, %v110
      %v113 = vadd.f32 %v105, %v109
      %v114 = vadd.f32 %v106, %v110
      %v115 = vld [vmem:[#allocation7] sm:$0xff]
      %v116 = vadd.f32 %v111, %v112
      %v117 = vadd.f32 %v115, %v116
      %118 = vst [vmem:[#allocation7] sm:$0xff] %v117
      %v119 = vld [vmem:[#allocation8] sm:$0xff]
      %v120 = vadd.f32 %v113, %v114
      %v121 = vadd.f32 %v119, %v120
      %122 = vst [vmem:[#allocation8] sm:$0xff] %v121
    $region29: #{tpu_custom_call.1} parent=1 // pred_fallthru
      _
    // Predicated region
    $region30: #{tpu_custom_call.1} parent=1 // pred_check
      _
    $region31: #{tpu_custom_call.1} parent=1 // pred_check_branch
      %124 = sbr.rel (0) target = $region33
    $region32: #{tpu_custom_call.1} parent=1 // pred_region
      %s126 = ssub.s32 128, 128
      %127 = vsyncadd [#allocation4], %s126
      %s129 = sshll.u32 [#allocation7], 4
      %s130 = int_to_ptr.vmem [resolvable:$true] %s129
      %132 = dma.vmem_to_hbm [thread:$0]  %s130, 128, %s2, [#allocation4]
    $region33: #{tpu_custom_call.1} parent=1 // pred_fallthru
      _
    // Predicated region
    $region34: #{tpu_custom_call.1} parent=1 // pred_check
      _
    $region35: #{tpu_custom_call.1} parent=1 // pred_check_branch
      %134 = sbr.rel (0) target = $region37
    $region36: #{tpu_custom_call.1} parent=1 // pred_region
      %s136 = ssub.s32 128, 128
      %137 = vsyncadd [#allocation9], %s136
      %s139 = sshll.u32 [#allocation8], 4
      %s140 = int_to_ptr.vmem [resolvable:$true] %s139
      %142 = dma.vmem_to_hbm [thread:$0]  %s140, 128, %s3, [#allocation9]
    $region37: #{tpu_custom_call.1} parent=1 // pred_fallthru
      _
    // Predicated region
    $region38: #{tpu_custom_call.1} parent=1 // pred_check
      _
    $region39: #{tpu_custom_call.1} parent=1 // pred_check_branch
      %144 = sbr.rel (0) target = $region41
    $region40: #{tpu_custom_call.1} parent=1 // pred_region
      %145 = dma.done [#allocation4], 128
    $region41: #{tpu_custom_call.1} parent=1 // pred_fallthru
      _
    // Predicated region
    $region42: #{tpu_custom_call.1} parent=1 // pred_check
      _
    $region43: #{tpu_custom_call.1} parent=1 // pred_check_branch
      %147 = sbr.rel (0) target = $region45
    $region44: #{tpu_custom_call.1} parent=1 // pred_region
      %148 = dma.done [#allocation9], 128
    $region45: #{tpu_custom_call.1} parent=1 // pred_fallthru
      _
    %149 = vsyncpa [#allocation3], 1
    %150 = vsyncpa [#allocation6], 1
    %151 = vsyncpa [#allocation4], 1
    %152 = vsyncpa [#allocation9], 1

</llo_original>
